<compile_context>
chip_gen: v6e
topology: v6e:2x2x1
jax: 0.10.0
libtpu: 0.0.40
codegen_flags: <defaults>
</compile_context>

<pallas_src>
import functools

import jax
import jax.numpy as jnp
from jax.experimental import pallas as pl
from jax.experimental.pallas import tpu as pltpu

LN_EPS = 1e-5  # PyTorch nn.LayerNorm default


def _round_up(n, m):
    return ((n + m - 1) // m) * m


def _ln(y, gamma, beta):
    mu = jnp.mean(y, axis=-1, keepdims=True)
    var = jnp.mean((y - mu) ** 2, axis=-1, keepdims=True)
    return (y - mu) * jax.lax.rsqrt(var + LN_EPS) * gamma + beta


# ----------------------------------------------------------------------------
# Pallas kernels
# ----------------------------------------------------------------------------

def _linear_kernel(x_ref, w_ref, b_ref, g_ref, be_ref, o_ref, *, apply_ln, apply_relu):
    """Fused (x @ W + b) [-> LayerNorm] [-> ReLU] on one row-tile."""
    y = jnp.dot(x_ref[...], w_ref[...], preferred_element_type=jnp.float32) + b_ref[...]
    if apply_ln:
        y = _ln(y, g_ref[...], be_ref[...])
    if apply_relu:
        y = jnp.maximum(y, 0.0)
    o_ref[...] = y


def pallas_linear(x, w, b, gamma=None, beta=None, *, apply_ln=False, apply_relu=False,
                  block_rows=512):
    """x: (M, Cin) f32, w: (Cin, Cout), b: (Cout,) -> (M, Cout)."""
    M0, Cin = x.shape
    Cout = w.shape[1]
    if gamma is None:
        gamma = jnp.ones((Cout,), jnp.float32)
    if beta is None:
        beta = jnp.zeros((Cout,), jnp.float32)
    bm = min(block_rows, _round_up(M0, 8))
    M = _round_up(M0, bm)
    if M != M0:
        x = jnp.pad(x, ((0, M - M0), (0, 0)))
    kernel = functools.partial(_linear_kernel, apply_ln=apply_ln, apply_relu=apply_relu)
    row = lambda i: (i, 0)
    rep = lambda i: (0, 0)
    out = pl.pallas_call(
        kernel,
        out_shape=jax.ShapeDtypeStruct((M, Cout), jnp.float32),
        grid=(M // bm,),
        in_specs=[
            pl.BlockSpec((bm, Cin), row),
            pl.BlockSpec((Cin, Cout), rep),
            pl.BlockSpec((1, Cout), rep),
            pl.BlockSpec((1, Cout), rep),
            pl.BlockSpec((1, Cout), rep),
        ],
        out_specs=pl.BlockSpec((bm, Cout), row),
        compiler_params=pltpu.CompilerParams(dimension_semantics=("parallel",)),
    )(x, w, b.reshape(1, Cout), gamma.reshape(1, Cout), beta.reshape(1, Cout))
    return out[:M0] if M != M0 else out


def _ff_kernel(x_ref, br_ref, w1_ref, b1_ref, w2_ref, b2_ref,
               g1_ref, be1_ref, g2_ref, be2_ref, o_ref):
    """Entire FeedForward for one row tile: LN(x+branch) -> lin1+ReLU -> lin2 -> LN(residual)."""
    x1 = _ln(x_ref[...] + br_ref[...], g1_ref[...], be1_ref[...])
    h = jnp.dot(x1, w1_ref[...], preferred_element_type=jnp.float32) + b1_ref[...]
    h = jnp.maximum(h, 0.0)
    br2 = jnp.dot(h, w2_ref[...], preferred_element_type=jnp.float32) + b2_ref[...]
    o_ref[...] = _ln(x1 + br2, g2_ref[...], be2_ref[...])


def pallas_feed_forward(x, branch, p, *, block_rows=512):
    M0, C = x.shape
    F = p["lin1_w"].shape[1]
    bm = min(block_rows, _round_up(M0, 8))
    M = _round_up(M0, bm)
    if M != M0:
        pad = ((0, M - M0), (0, 0))
        x = jnp.pad(x, pad)
        branch = jnp.pad(branch, pad)
    row = lambda i: (i, 0)
    rep = lambda i: (0, 0)
    out = pl.pallas_call(
        _ff_kernel,
        out_shape=jax.ShapeDtypeStruct((M, C), jnp.float32),
        grid=(M // bm,),
        in_specs=[
            pl.BlockSpec((bm, C), row),
            pl.BlockSpec((bm, C), row),
            pl.BlockSpec((C, F), rep),
            pl.BlockSpec((1, F), rep),
            pl.BlockSpec((F, C), rep),
            pl.BlockSpec((1, C), rep),
            pl.BlockSpec((1, C), rep),
            pl.BlockSpec((1, C), rep),
            pl.BlockSpec((1, C), rep),
            pl.BlockSpec((1, C), rep),
        ],
        out_specs=pl.BlockSpec((bm, C), row),
        compiler_params=pltpu.CompilerParams(dimension_semantics=("parallel",)),
    )(x, branch, p["lin1_w"], p["lin1_b"].reshape(1, F),
      p["lin2_w"], p["lin2_b"].reshape(1, C),
      p["norm1_g"].reshape(1, C), p["norm1_b"].reshape(1, C),
      p["norm2_g"].reshape(1, C), p["norm2_b"].reshape(1, C))
    return out[:M0] if M != M0 else out


def _pq_kernel(x_ref, wp_ref, bp_ref, gp_ref, bep_ref, wq_ref, bq_ref, p_ref, q_ref):
    """Fused fc_P (Linear+LN) and fc_Q (Linear) + clamp / max-over-K / exp for one batch."""
    x = x_ref[0]                                        # (K, L, Cin)
    K, L, Cin = x.shape
    xf = x.reshape(K * L, Cin)
    P = jnp.dot(xf, wp_ref[...], preferred_element_type=jnp.float32) + bp_ref[...]
    P = _ln(P, gp_ref[...], bep_ref[...])
    Q = jnp.dot(xf, wq_ref[...], preferred_element_type=jnp.float32) + bq_ref[...]
    Q = jnp.clip(Q, -20.0, 20.0)
    CPQ = Q.shape[-1]
    Qr = Q.reshape(K, L, CPQ)
    Qr = Qr - jnp.max(Qr, axis=0, keepdims=True)        # max over K (in-kernel)
    p_ref[...] = P.reshape(1, K, L, CPQ)
    q_ref[...] = jnp.exp(Qr)[None]


def pallas_pq(x1d, p):
    """x1d: (B, K, L, Cin) -> P, exp(Q - maxK(clamp(Q))) both (B, K, L, CPQ)."""
    B, K, L, Cin = x1d.shape
    CPQ = p["fc_P_w"].shape[1]
    rep2 = lambda b: (0, 0)
    blk4 = lambda b: (b, 0, 0, 0)
    out_shape = (jax.ShapeDtypeStruct((B, K, L, CPQ), jnp.float32),
                 jax.ShapeDtypeStruct((B, K, L, CPQ), jnp.float32))
    P, Qe = pl.pallas_call(
        _pq_kernel,
        out_shape=out_shape,
        grid=(B,),
        in_specs=[
            pl.BlockSpec((1, K, L, Cin), blk4),
            pl.BlockSpec((Cin, CPQ), rep2),
            pl.BlockSpec((1, CPQ), rep2),
            pl.BlockSpec((1, CPQ), rep2),
            pl.BlockSpec((1, CPQ), rep2),
            pl.BlockSpec((Cin, CPQ), rep2),
            pl.BlockSpec((1, CPQ), rep2),
        ],
        out_specs=[
            pl.BlockSpec((1, K, L, CPQ), blk4),
            pl.BlockSpec((1, K, L, CPQ), blk4),
        ],
        compiler_params=pltpu.CompilerParams(dimension_semantics=("parallel",)),
    )(x1d, p["fc_P_w"], p["fc_P_b"].reshape(1, CPQ), p["fc_P_ln_g"].reshape(1, CPQ),
      p["fc_P_ln_b"].reshape(1, CPQ), p["fc_Q_w"], p["fc_Q_b"].reshape(1, CPQ))
    return P, Qe


def _aggregate_kernel(p_ref, q_ref, o_ref):
    """YAggregator.aggregate for ALL heads of one batch:
       PQ = P*Q ; X = sum_K PQ PQ^T ; Y = sum_K Q Q^T + 1e-6 ; out = X / Y."""
    p = p_ref[0]                                        # (H, K, M)
    q = q_ref[0]
    pq = p * q
    # contraction over K (axis 1), batch over heads -> no explicit transposes
    X = jnp.einsum('hkm,hkn->hmn', pq, pq, preferred_element_type=jnp.float32)
    Y = jnp.einsum('hkm,hkn->hmn', q, q, preferred_element_type=jnp.float32) + 1e-6
    o_ref[...] = (X / Y)[None]


def pallas_aggregate(P, Q):
    """P, Q: (B, H, K, M) -> (B, H, M, M)."""
    B, H, K, M = P.shape
    blk = lambda b: (b, 0, 0, 0)
    return pl.pallas_call(
        _aggregate_kernel,
        out_shape=jax.ShapeDtypeStruct((B, H, M, M), jnp.float32),
        grid=(B,),
        in_specs=[
            pl.BlockSpec((1, H, K, M), blk),
            pl.BlockSpec((1, H, K, M), blk),
        ],
        out_specs=pl.BlockSpec((1, H, M, M), blk),
        compiler_params=pltpu.CompilerParams(dimension_semantics=("parallel",)),
    )(P, Q)


def _proj2_kernel(a_ref, x2_ref, w1_ref, w2_ref, b_ref, g_ref, be_ref, o_ref):
    """Linear(concat[agg, x2d]) + LayerNorm + ReLU with the concat done by weight split."""
    y = jnp.dot(a_ref[...], w1_ref[...], preferred_element_type=jnp.float32)
    y = y + jnp.dot(x2_ref[...], w2_ref[...], preferred_element_type=jnp.float32)
    y = _ln(y + b_ref[...], g_ref[...], be_ref[...])
    o_ref[...] = jnp.maximum(y, 0.0)


def pallas_proj_concat(agg, x2d, w, b, gamma, beta, *, block_rows=512):
    M0, D1 = agg.shape
    D2 = x2d.shape[1]
    Cout = w.shape[1]
    w1 = w[:D1]
    w2 = w[D1:]
    bm = min(block_rows, _round_up(M0, 8))
    M = _round_up(M0, bm)
    if M != M0:
        agg = jnp.pad(agg, ((0, M - M0), (0, 0)))
        x2d = jnp.pad(x2d, ((0, M - M0), (0, 0)))
    row = lambda i: (i, 0)
    rep = lambda i: (0, 0)
    out = pl.pallas_call(
        _proj2_kernel,
        out_shape=jax.ShapeDtypeStruct((M, Cout), jnp.float32),
        grid=(M // bm,),
        in_specs=[
            pl.BlockSpec((bm, D1), row),
            pl.BlockSpec((bm, D2), row),
            pl.BlockSpec((D1, Cout), rep),
            pl.BlockSpec((D2, Cout), rep),
            pl.BlockSpec((1, Cout), rep),
            pl.BlockSpec((1, Cout), rep),
            pl.BlockSpec((1, Cout), rep),
        ],
        out_specs=pl.BlockSpec((bm, Cout), row),
        compiler_params=pltpu.CompilerParams(dimension_semantics=("parallel",)),
    )(agg, x2d, w1, w2, b.reshape(1, Cout), gamma.reshape(1, Cout), beta.reshape(1, Cout))
    return out[:M0] if M != M0 else out


def _attn_kernel(att_ref, v_ref, o_ref):
    """softmax over last axis computed ONCE per (b,h), then one matmul against (L, K*hd)."""
    logits = att_ref[0, 0]                              # (L, L)
    logits = logits - jnp.max(logits, axis=-1, keepdims=True)
    p = jnp.exp(logits)
    p = p * pl.reciprocal(jnp.sum(p, axis=-1, keepdims=True), approx=True)
    out = jnp.dot(p, v_ref[0, 0], preferred_element_type=jnp.float32)
    o_ref[...] = out[None, None]


def pallas_attention(att_logits, value_r):
    """att_logits: (B, H, L, L); value_r: (B, H, L, N) -> (B, H, L, N)."""
    B, H, L, _ = att_logits.shape
    N = value_r.shape[-1]
    return pl.pallas_call(
        _attn_kernel,
        out_shape=jax.ShapeDtypeStruct((B, H, L, N), jnp.float32),
        grid=(B, H),
        in_specs=[
            pl.BlockSpec((1, 1, L, L), lambda b, h: (b, h, 0, 0)),
            pl.BlockSpec((1, 1, L, N), lambda b, h: (b, h, 0, 0)),
        ],
        out_specs=pl.BlockSpec((1, 1, L, N), lambda b, h: (b, h, 0, 0)),
        compiler_params=pltpu.CompilerParams(
            dimension_semantics=("parallel", "parallel")),
    )(att_logits, value_r)


def _conv_res_relu_kernel(xp_ref, w_ref, b_ref, o_ref, *, L, C, dilation):
    """relu(x + dilated_conv3x3(x)) for one batch image; 9 shifted matmuls accumulated in VMEM."""
    xp = xp_ref[0]                                      # (L+2d, L+2d, C), halo-padded
    Cout = w_ref.shape[1]
    acc = jnp.zeros((L * L, Cout), jnp.float32)
    for kh in range(3):
        for kw in range(3):
            win = xp[kh * dilation:kh * dilation + L,
                     kw * dilation:kw * dilation + L, :].reshape(L * L, C)
            kidx = kh * 3 + kw
            acc = acc + jnp.dot(win, w_ref[kidx * C:(kidx + 1) * C, :],
                                preferred_element_type=jnp.float32)
    y = acc + b_ref[...]
    xc = xp[dilation:dilation + L, dilation:dilation + L, :].reshape(L * L, C)
    o_ref[...] = jnp.maximum(xc + y, 0.0).reshape(1, L, L, Cout)


def pallas_conv3x3_res_relu(x, w, b, dilation):
    """NHWC dilated 3x3 conv, 'same' padding, fused residual + ReLU.
    w layout: (9*Cin, Cout), patch order (kh, kw, cin); requires H == W and Cin == Cout."""
    B, H, W, C = x.shape
    Cout = w.shape[1]
    d = dilation
    xp = jnp.pad(x, ((0, 0), (d, d), (d, d), (0, 0)))   # halo pad only (no 9x im2col tensor)
    Hp = H + 2 * d
    kernel = functools.partial(_conv_res_relu_kernel, L=H, C=C, dilation=d)
    return pl.pallas_call(
        kernel,
        out_shape=jax.ShapeDtypeStruct((B, H, W, Cout), jnp.float32),
        grid=(B,),
        in_specs=[
            pl.BlockSpec((1, Hp, Hp, C), lambda bi: (bi, 0, 0, 0)),
            pl.BlockSpec((9 * C, Cout), lambda bi: (0, 0)),
            pl.BlockSpec((1, Cout), lambda bi: (0, 0)),
        ],
        out_specs=pl.BlockSpec((1, H, W, Cout), lambda bi: (bi, 0, 0, 0)),
        compiler_params=pltpu.CompilerParams(dimension_semantics=("parallel",)),
    )(xp, w, b.reshape(1, Cout))


# ----------------------------------------------------------------------------
# Module forward passes (JAX glue around the Pallas kernels)
# ----------------------------------------------------------------------------

def transpose_for_attention(x, nhead):
    """(B, K, L, C) -> (B, nhead, K, L * C/nhead)   (YAggregator.transpose_for_attention)."""
    B, K, L, C = x.shape
    nhid = C // nhead
    x = x.reshape(B, K, L, nhead, nhid)
    x = jnp.transpose(x, (0, 3, 1, 2, 4))
    return x.reshape(B, nhead, K, L * nhid)


def y_aggregator_forward(params, x1d, x2d, *, nhead, nhid):
    B, K, L, C = x1d.shape
    # Fused fc_P (Linear+LN), fc_Q (Linear), clamp, max-over-K, exp — single kernel.
    P, Q = pallas_pq(x1d, params)                       # (B, K, L, nhead*nhid) each
    Pt = transpose_for_attention(P, nhead)              # (B, nhead, K, L*nhid)
    Qt = transpose_for_attention(Q, nhead)
    agg = pallas_aggregate(Pt, Qt)                      # (B, nhead, L*nhid, L*nhid)
    agg = agg.reshape(B, nhead, L, nhid, L, nhid)
    agg = jnp.transpose(agg, (0, 2, 4, 1, 3, 5)).reshape(B, L, L, nhead * nhid * nhid)
    D1 = agg.shape[-1]
    if x2d is not None:
        # concat with x2d is folded into the projection kernel by splitting its weights
        out = pallas_proj_concat(agg.reshape(B * L * L, D1),
                                 x2d.reshape(B * L * L, -1),
                                 params["proj_w"], params["proj_b"],
                                 params["proj_ln_g"], params["proj_ln_b"])
    else:
        out = pallas_linear(agg.reshape(B * L * L, D1), params["proj_w"], params["proj_b"],
                            params["proj_ln_g"], params["proj_ln_b"],
                            apply_ln=True, apply_relu=True)
    return out.reshape(B, L, L, -1)


# TODO(synk): `make_layers` is not provided in the reference source; the ZRefiner is
# implemented here as `repeats` cycles over dilations [1, 2, 4, 8] of residual blocks
# x = relu(x + conv3x3_dilated(x)) with constant channel count.
def z_refiner_forward(params, x, repeats, dilations=(1, 2, 4, 8)):
    idx = 0
    for _ in range(repeats):
        for d in dilations:
            x = pallas_conv3x3_res_relu(x, params["conv_ws"][idx], params["conv_bs"][idx], d)
            idx += 1
    return x


def z_attention_forward(params, x1d, x2d, *, ninp, nhead, rn_layers):
    B, K, L, C = x1d.shape
    # YAggregator is built with nhead=ninp, nhid=2 in ZAttention.__init__
    x2d = y_aggregator_forward(params["agg"], x1d, x2d, nhead=ninp, nhid=2)
    x2d = z_refiner_forward(params["refiner"], x2d, rn_layers)

    rn_inp = x2d.shape[-1]
    att = pallas_linear(x2d.reshape(B * L * L, rn_inp), params["proj_w"], params["proj_b"])
    att = att.reshape(B, L, L, nhead)
    att = jnp.transpose(att, (0, 3, 1, 2))              # (B, nhead, L, L) logits

    value = pallas_linear(x1d.reshape(B * K * L, C), params["fc_value_w"], params["fc_value_b"])
    hd = ninp // nhead
    value = value.reshape(B, K, L, nhead, hd)
    # (B, nhead, L, K*hd): one matmul per (b, h) covers all K slices (softmax not recomputed)
    value_r = jnp.transpose(value, (0, 3, 2, 1, 4)).reshape(B, nhead, L, K * hd)

    ctx = pallas_attention(att, value_r)                # (B, nhead, L, K*hd)
    ctx = ctx.reshape(B, nhead, L, K, hd)
    ctx = jnp.transpose(ctx, (0, 3, 2, 1, 4)).reshape(B, K, L, ninp)
    return ctx, x2d


def feed_forward_forward(params, x, branch):
    # The chunked loop over dim 1 in the reference is a semantic no-op (all ops are
    # per-row along the last axis); computed over the whole tensor, fully fused.
    B, K, L, C = x.shape
    out = pallas_feed_forward(x.reshape(B * K * L, C), branch.reshape(B * K * L, C), params)
    return out.reshape(B, K, L, C)


def z_block_forward(params, x1d, x2d, *, ninp, nhead, rn_layers):
    branch, x2d = z_attention_forward(params["attn"], x1d, x2d,
                                      ninp=ninp, nhead=nhead, rn_layers=rn_layers)
    x1d = feed_forward_forward(params["ff"], x1d, branch)
    return x1d, x2d


# ----------------------------------------------------------------------------
# Deterministic parameter initialization (synthetic weights)
# ----------------------------------------------------------------------------

def init_params(key, *, ninp, nhead, dim2d, rn_inp, rn_layers, dim_feedforward):
    keys = list(jax.random.split(key, 64))
    it = iter(keys)

    def w(shape, scale=0.1):
        return (scale * jax.random.normal(next(it), shape)).astype(jnp.float32)

    nhead_agg, nhid = ninp, 2
    agg = dict(
        fc_P_w=w((ninp, nhead_agg * nhid)), fc_P_b=w((nhead_agg * nhid,)),
        fc_P_ln_g=jnp.ones((nhead_agg * nhid,), jnp.float32),
        fc_P_ln_b=jnp.zeros((nhead_agg * nhid,), jnp.float32),
        fc_Q_w=w((ninp, nhead_agg * nhid)), fc_Q_b=w((nhead_agg * nhid,)),
        proj_w=w((nhead_agg * nhid * nhid + dim2d, rn_inp)), proj_b=w((rn_inp,)),
        proj_ln_g=jnp.ones((rn_inp,), jnp.float32),
        proj_ln_b=jnp.zeros((rn_inp,), jnp.float32),
    )
    n_blocks = rn_layers * 4
    refiner = dict(
        conv_ws=[w((9 * rn_inp, rn_inp), 0.05) for _ in range(n_blocks)],
        conv_bs=[w((rn_inp,)) for _ in range(n_blocks)],
    )
    attn = dict(
        agg=agg, refiner=refiner,
        fc_value_w=w((ninp, ninp)), fc_value_b=w((ninp,)),
        proj_w=w((rn_inp, nhead)), proj_b=w((nhead,)),
    )
    ff = dict(
        lin1_w=w((ninp, dim_feedforward)), lin1_b=w((dim_feedforward,)),
        lin2_w=w((dim_feedforward, ninp)), lin2_b=w((ninp,)),
        norm1_g=jnp.ones((ninp,), jnp.float32), norm1_b=jnp.zeros((ninp,), jnp.float32),
        norm2_g=jnp.ones((ninp,), jnp.float32), norm2_b=jnp.zeros((ninp,), jnp.float32),
    )
    return dict(attn=attn, ff=ff)


# ----------------------------------------------------------------------------
# Main
# ----------------------------------------------------------------------------

if __name__ == "__main__":
    B, K, L = 2, 4, 8
    ninp, nhead = 8, 4
    dim2d, rn_inp, rn_layers = 6, 16, 1
    dim_feedforward = 32
    # dropout treated as 0.0 / eval mode (identity)

    key = jax.random.PRNGKey(0)
    k1, k2, kp = jax.random.split(key, 3)
    x1d = jax.random.normal(k1, (B, K, L, ninp), dtype=jnp.float32)
    x2d = jax.random.normal(k2, (B, L, L, dim2d), dtype=jnp.float32)

    params = init_params(kp, ninp=ninp, nhead=nhead, dim2d=dim2d, rn_inp=rn_inp,
                         rn_layers=rn_layers, dim_feedforward=dim_feedforward)

    out1d, out2d = z_block_forward(params, x1d, x2d,
                                   ninp=ninp, nhead=nhead, rn_layers=rn_layers)
    jax.block_until_ready((out1d, out2d))

    assert out1d.shape == (B, K, L, ninp), out1d.shape
    assert out2d.shape == (B, L, L, rn_inp), out2d.shape
    assert bool(jnp.all(jnp.isfinite(out1d))) and bool(jnp.all(jnp.isfinite(out2d)))
    print("KERNEL_OK")
</pallas_src>

<mosaic_0001>
module attributes {stable_mosaic.version = 11 : i64} {
  func.func @_pq_kernel(%arg0: i32, %arg1: memref<1x4x8x8xf32, #tpu.memory_space<vmem>>, %arg2: memref<8x16xf32, #tpu.memory_space<vmem>>, %arg3: memref<1x16xf32, #tpu.memory_space<vmem>>, %arg4: memref<1x16xf32, #tpu.memory_space<vmem>>, %arg5: memref<1x16xf32, #tpu.memory_space<vmem>>, %arg6: memref<8x16xf32, #tpu.memory_space<vmem>>, %arg7: memref<1x16xf32, #tpu.memory_space<vmem>>, %arg8: memref<1x4x8x16xf32, #tpu.memory_space<vmem>>, %arg9: memref<1x4x8x16xf32, #tpu.memory_space<vmem>>) attributes {dimension_semantics = [#tpu.dimension_semantics<parallel>], iteration_bounds = array<i64: 2>, scalar_prefetch = 0 : i64, scratch_operands = 0 : i64, tpu.core_type = #tpu.core_type<tc>, window_params = [{transform_indices = @transform_0, window_bounds = array<i64: 1, 4, 8, 8>}, {pipeline_mode = #tpu.pipeline_mode<synchronous>, transform_indices = @transform_1, window_bounds = array<i64: 8, 16>}, {pipeline_mode = #tpu.pipeline_mode<synchronous>, transform_indices = @transform_2, window_bounds = array<i64: 1, 16>}, {pipeline_mode = #tpu.pipeline_mode<synchronous>, transform_indices = @transform_3, window_bounds = array<i64: 1, 16>}, {pipeline_mode = #tpu.pipeline_mode<synchronous>, transform_indices = @transform_4, window_bounds = array<i64: 1, 16>}, {pipeline_mode = #tpu.pipeline_mode<synchronous>, transform_indices = @transform_5, window_bounds = array<i64: 8, 16>}, {pipeline_mode = #tpu.pipeline_mode<synchronous>, transform_indices = @transform_6, window_bounds = array<i64: 1, 16>}, {transform_indices = @transform_7, window_bounds = array<i64: 1, 4, 8, 16>}, {transform_indices = @transform_8, window_bounds = array<i64: 1, 4, 8, 16>}]} {
    %c0 = arith.constant 0 : index
    %c0_0 = arith.constant 0 : index
    %c0_1 = arith.constant 0 : index
    %c0_2 = arith.constant 0 : index
    %0 = vector.load %arg1[%c0, %c0_0, %c0_1, %c0_2] : memref<1x4x8x8xf32, #tpu.memory_space<vmem>>, vector<1x4x8x8xf32>
    %1 = vector.shape_cast %0 : vector<1x4x8x8xf32> to vector<4x8x8xf32>
    %2 = vector.shape_cast %1 : vector<4x8x8xf32> to vector<32x8xf32>
    %c0_3 = arith.constant 0 : index
    %c0_4 = arith.constant 0 : index
    %3 = vector.load %arg2[%c0_3, %c0_4] : memref<8x16xf32, #tpu.memory_space<vmem>>, vector<8x16xf32>
    %cst = arith.constant dense<0.000000e+00> : vector<32x16xf32>
    %4 = tpu.matmul %2, %3, %cst {dimension_numbers = #tpu.dot_dimension_numbers<[1], [0], [0], [1], [0, 0, 1, 1], [], []>} : vector<32x8xf32>, vector<8x16xf32>, vector<32x16xf32> -> vector<32x16xf32>
    %c0_5 = arith.constant 0 : index
    %c0_6 = arith.constant 0 : index
    %5 = vector.load %arg3[%c0_5, %c0_6] : memref<1x16xf32, #tpu.memory_space<vmem>>, vector<1x16xf32>
    %6 = vector.broadcast %5 : vector<1x16xf32> to vector<32x16xf32>
    %7 = arith.addf %4, %6 : vector<32x16xf32>
    %c0_7 = arith.constant 0 : index
    %c0_8 = arith.constant 0 : index
    %8 = vector.load %arg4[%c0_7, %c0_8] : memref<1x16xf32, #tpu.memory_space<vmem>>, vector<1x16xf32>
    %c0_9 = arith.constant 0 : index
    %c0_10 = arith.constant 0 : index
    %9 = vector.load %arg5[%c0_9, %c0_10] : memref<1x16xf32, #tpu.memory_space<vmem>>, vector<1x16xf32>
    %cst_11 = arith.constant dense<0.000000e+00> : vector<32xf32>
    %10 = vector.multi_reduction <add>, %7, %cst_11 [1] : vector<32x16xf32> to vector<32xf32>
    %11 = vector.shape_cast %10 : vector<32xf32> to vector<32x1xf32>
    %cst_12 = arith.constant 1.600000e+01 : f32
    %12 = vector.broadcast %cst_12 : f32 to vector<32x1xf32>
    %13 = arith.divf %11, %12 : vector<32x1xf32>
    %14 = vector.broadcast %13 : vector<32x1xf32> to vector<32x16xf32>
    %15 = arith.subf %7, %14 : vector<32x16xf32>
    %16 = arith.mulf %15, %15 : vector<32x16xf32>
    %cst_13 = arith.constant dense<0.000000e+00> : vector<32xf32>
    %17 = vector.multi_reduction <add>, %16, %cst_13 [1] : vector<32x16xf32> to vector<32xf32>
    %18 = vector.shape_cast %17 : vector<32xf32> to vector<32x1xf32>
    %cst_14 = arith.constant 1.600000e+01 : f32
    %19 = vector.broadcast %cst_14 : f32 to vector<32x1xf32>
    %20 = arith.divf %18, %19 : vector<32x1xf32>
    %21 = vector.broadcast %13 : vector<32x1xf32> to vector<32x16xf32>
    %22 = arith.subf %7, %21 : vector<32x16xf32>
    %cst_15 = arith.constant 9.99999974E-6 : f32
    %23 = vector.broadcast %cst_15 : f32 to vector<32x1xf32>
    %24 = arith.addf %20, %23 : vector<32x1xf32>
    %25 = math.rsqrt %24 : vector<32x1xf32>
    %26 = vector.broadcast %25 : vector<32x1xf32> to vector<32x16xf32>
    %27 = arith.mulf %22, %26 : vector<32x16xf32>
    %28 = vector.broadcast %8 : vector<1x16xf32> to vector<32x16xf32>
    %29 = arith.mulf %27, %28 : vector<32x16xf32>
    %30 = vector.broadcast %9 : vector<1x16xf32> to vector<32x16xf32>
    %31 = arith.addf %29, %30 : vector<32x16xf32>
    %c0_16 = arith.constant 0 : index
    %c0_17 = arith.constant 0 : index
    %32 = vector.load %arg6[%c0_16, %c0_17] : memref<8x16xf32, #tpu.memory_space<vmem>>, vector<8x16xf32>
    %cst_18 = arith.constant dense<0.000000e+00> : vector<32x16xf32>
    %33 = tpu.matmul %2, %32, %cst_18 {dimension_numbers = #tpu.dot_dimension_numbers<[1], [0], [0], [1], [0, 0, 1, 1], [], []>} : vector<32x8xf32>, vector<8x16xf32>, vector<32x16xf32> -> vector<32x16xf32>
    %c0_19 = arith.constant 0 : index
    %c0_20 = arith.constant 0 : index
    %34 = vector.load %arg7[%c0_19, %c0_20] : memref<1x16xf32, #tpu.memory_space<vmem>>, vector<1x16xf32>
    %35 = vector.broadcast %34 : vector<1x16xf32> to vector<32x16xf32>
    %36 = arith.addf %33, %35 : vector<32x16xf32>
    %cst_21 = arith.constant -2.000000e+01 : f32
    %cst_22 = arith.constant 2.000000e+01 : f32
    %37 = vector.broadcast %cst_21 : f32 to vector<32x16xf32>
    %38 = arith.maximumf %37, %36 : vector<32x16xf32>
    %39 = vector.broadcast %cst_22 : f32 to vector<32x16xf32>
    %40 = arith.minimumf %39, %38 : vector<32x16xf32>
    %41 = vector.shape_cast %40 : vector<32x16xf32> to vector<4x8x16xf32>
    %cst_23 = arith.constant dense<0xFF800000> : vector<8x16xf32>
    %42 = vector.multi_reduction <maximumf>, %41, %cst_23 [0] : vector<4x8x16xf32> to vector<8x16xf32>
    %43 = vector.shape_cast %42 : vector<8x16xf32> to vector<1x8x16xf32>
    %44 = vector.broadcast %43 : vector<1x8x16xf32> to vector<4x8x16xf32>
    %45 = arith.subf %41, %44 : vector<4x8x16xf32>
    %46 = vector.shape_cast %31 : vector<32x16xf32> to vector<1x4x8x16xf32>
    %c0_24 = arith.constant 0 : index
    %c0_25 = arith.constant 0 : index
    %c0_26 = arith.constant 0 : index
    %c0_27 = arith.constant 0 : index
    %47 = vector.load %arg8[%c0_24, %c0_25, %c0_26, %c0_27] : memref<1x4x8x16xf32, #tpu.memory_space<vmem>>, vector<1x4x8x16xf32>
    tpu.vector_store %arg8[%c0_24, %c0_25, %c0_26, %c0_27], %46 {strides = array<i32>} : memref<1x4x8x16xf32, #tpu.memory_space<vmem>>, vector<1x4x8x16xf32>,
    %48 = math.exp %45 : vector<4x8x16xf32>
    %49 = vector.shape_cast %48 : vector<4x8x16xf32> to vector<1x4x8x16xf32>
    %c0_28 = arith.constant 0 : index
    %c0_29 = arith.constant 0 : index
    %c0_30 = arith.constant 0 : index
    %c0_31 = arith.constant 0 : index
    %50 = vector.load %arg9[%c0_28, %c0_29, %c0_30, %c0_31] : memref<1x4x8x16xf32, #tpu.memory_space<vmem>>, vector<1x4x8x16xf32>
    tpu.vector_store %arg9[%c0_28, %c0_29, %c0_30, %c0_31], %49 {strides = array<i32>} : memref<1x4x8x16xf32, #tpu.memory_space<vmem>>, vector<1x4x8x16xf32>,
    return
  }
  func.func @transform_0(%arg0: i32) -> (i32, i32, i32, i32) {
    %c0_i32 = arith.constant 0 : i32
    %c0_i32_0 = arith.constant 0 : i32
    %c0_i32_1 = arith.constant 0 : i32
    %c0_i32_2 = arith.constant 0 : i32
    return %arg0, %c0_i32, %c0_i32_0, %c0_i32_1 : i32, i32, i32, i32
  }
  func.func @transform_1(%arg0: i32) -> (i32, i32) {
    %c0_i32 = arith.constant 0 : i32
    %c0_i32_0 = arith.constant 0 : i32
    %c0_i32_1 = arith.constant 0 : i32
    return %c0_i32, %c0_i32_0 : i32, i32
  }
  func.func @transform_2(%arg0: i32) -> (i32, i32) {
    %c0_i32 = arith.constant 0 : i32
    %c0_i32_0 = arith.constant 0 : i32
    %c0_i32_1 = arith.constant 0 : i32
    return %c0_i32, %c0_i32_0 : i32, i32
  }
  func.func @transform_3(%arg0: i32) -> (i32, i32) {
    %c0_i32 = arith.constant 0 : i32
    %c0_i32_0 = arith.constant 0 : i32
    %c0_i32_1 = arith.constant 0 : i32
    return %c0_i32, %c0_i32_0 : i32, i32
  }
  func.func @transform_4(%arg0: i32) -> (i32, i32) {
    %c0_i32 = arith.constant 0 : i32
    %c0_i32_0 = arith.constant 0 : i32
    %c0_i32_1 = arith.constant 0 : i32
    return %c0_i32, %c0_i32_0 : i32, i32
  }
  func.func @transform_5(%arg0: i32) -> (i32, i32) {
    %c0_i32 = arith.constant 0 : i32
    %c0_i32_0 = arith.constant 0 : i32
    %c0_i32_1 = arith.constant 0 : i32
    return %c0_i32, %c0_i32_0 : i32, i32
  }
  func.func @transform_6(%arg0: i32) -> (i32, i32) {
    %c0_i32 = arith.constant 0 : i32
    %c0_i32_0 = arith.constant 0 : i32
    %c0_i32_1 = arith.constant 0 : i32
    return %c0_i32, %c0_i32_0 : i32, i32
  }
  func.func @transform_7(%arg0: i32) -> (i32, i32, i32, i32) {
    %c0_i32 = arith.constant 0 : i32
    %c0_i32_0 = arith.constant 0 : i32
    %c0_i32_1 = arith.constant 0 : i32
    %c0_i32_2 = arith.constant 0 : i32
    return %arg0, %c0_i32, %c0_i32_0, %c0_i32_1 : i32, i32, i32, i32
  }
  func.func @transform_8(%arg0: i32) -> (i32, i32, i32, i32) {
    %c0_i32 = arith.constant 0 : i32
    %c0_i32_0 = arith.constant 0 : i32
    %c0_i32_1 = arith.constant 0 : i32
    %c0_i32_2 = arith.constant 0 : i32
    return %arg0, %c0_i32, %c0_i32_0, %c0_i32_1 : i32, i32, i32, i32
  }
}

</mosaic_0001>

<llo_original>
// kernel: tpu_custom_call.1
$region0: #{tpu_custom_call.1}
  #allocation0 [shape = 'u32[]', space=smem, size = 0x4, offset = 0x4, fixed_abs, tag = 'smem constant byte address 0x4 - core index']
  #allocation1 [shape = 'u32[144,128]{1,0:T(1,128)}', space=vmem, size = 0x12000, scoped, tag = 'internal scratch']
  %s0 = inlined_call_operand.hbm [shape: f32[2,4,8,8], index: 0, kind: input, shape index: {}]
  %s1 = inlined_call_operand.hbm [shape: f32[8,16], index: 1, kind: input, shape index: {}]
  %s2 = inlined_call_operand.vmem [shape: f32[1,16], index: 2, kind: input, shape index: {}]
  %s3 = inlined_call_operand.hbm [shape: f32[1,16], index: 3, kind: input, shape index: {}]
  %s4 = inlined_call_operand.hbm [shape: f32[1,16], index: 4, kind: input, shape index: {}]
  %s5 = inlined_call_operand.vmem [shape: f32[8,16], index: 5, kind: input, shape index: {}]
  %s6 = inlined_call_operand.vmem [shape: f32[1,16], index: 6, kind: input, shape index: {}]
  %s7 = inlined_call_operand.hbm [shape: f32[2,4,8,16], index: 7, kind: output, shape index: {0}]
  %s8 = inlined_call_operand.hbm [shape: f32[2,4,8,16], index: 8, kind: output, shape index: {1}]
  %9 = xla_tuple %s7, %s8
  %s10 = sld [smem:[#allocation0]]
  $region85: #{tpu_custom_call.1} parent=0
    _
  %s12 = ssub.s32 1, %s10
  %s13 = scalar_select 0, %s12, %s10
  $region1: #{tpu_custom_call.1} parent=0
    #allocation2 [shape = 'u8[32768]{0}', space=vmem, size = 0x8000, scoped, tag = 'input window, operand 0']
    #allocation3 [shape = 's32[2]{0}', space=sflag, size = 0x8, scoped, tag = 'scoped memory for tpu_custom_call.1']
    #allocation4 [shape = 's32[2]{0}', space=sflag, size = 0x8, scoped, tag = 'scoped memory for tpu_custom_call.1']
    #allocation5 [shape = 'u8[4096]{0}', space=vmem, size = 0x1000, scoped, tag = 'input window, operand 1, single buffered']
    #allocation6 [shape = 's32[1]{0}', space=sflag, size = 0x4, scoped, tag = 'scoped memory for tpu_custom_call.1']
    #allocation7 [shape = 'u8[512]{0}', space=vmem, size = 0x400, scoped, tag = 'input window, operand 3, single buffered']
    #allocation8 [shape = 'u8[512]{0}', space=vmem, size = 0x400, scoped, tag = 'input window, operand 4, single buffered']
    #allocation9 [shape = 's32[1]{0}', space=sflag, size = 0x4, scoped, tag = 'scoped memory for tpu_custom_call.1']
    #allocation10 [shape = 'u8[32768]{0}', space=vmem, size = 0x8000, scoped, tag = 'output window, operand 0']
    #allocation11 [shape = 'u8[32768]{0}', space=vmem, size = 0x8000, scoped, tag = 'output window, operand 1']
    #allocation12 [shape = 's32[2]{0}', space=sflag, size = 0x8, scoped, tag = 'scoped memory for tpu_custom_call.1']
    %14 = vsyncpa [#allocation3], 0
    %s15 = scalar_lea.sflag [#allocation3], 1
    %16 = vsyncpa %s15, 0
    %17 = vsyncpa [#allocation6], 0
    %18 = vsyncpa [#allocation9], 0
    %19 = vsyncpa [#allocation4], 0
    %s20 = scalar_lea.sflag [#allocation4], 1
    %21 = vsyncpa %s20, 0
    %22 = vsyncpa [#allocation12], 0
    %s23 = scalar_lea.sflag [#allocation12], 1
    %24 = vsyncpa %s23, 0
    loop: start=0, step=1, limit=4
    $region2: #{tpu_custom_call.1} parent=1 // loop_pre_header
      _
    $region3: #{tpu_custom_call.1} parent=1 // loop_header
      %s26 = sphi 0, %s30
      %p27 = scmp.ge.s32.totalorder %s26, 4
      %s36 = sphi 0, %s38
      %s39 = sphi 0, %s36
      %s40 = sphi 0, %s39
      %s56 = sphi 0, %s40
      %s60 = sphi 0, %s60
      %s62 = sphi 0, %s60
      %s63 = sphi 0, %s62
      %s77 = sphi 0, %s63
      %s81 = sphi 0, %s81
      %s83 = sphi 0, %s81
      %s84 = sphi 0, %s83
      %s98 = sphi 0, %s84
      %s102 = sphi 0, %s102
      %s104 = sphi 0, %s102
      %s105 = sphi 0, %s104
      %s119 = sphi 0, %s105
      %s123 = sphi 0, %s123
      %s125 = sphi 0, %s123
      %s126 = sphi 0, %s125
      %s140 = sphi 0, %s126
      %s144 = sphi 0, %s144
      %s146 = sphi 0, %s144
      %s147 = sphi 0, %s146
      %s161 = sphi 0, %s147
      %s165 = sphi 0, %s165
      %s167 = sphi 0, %s165
      %s168 = sphi 0, %s167
      %s182 = sphi 0, %s168
      %s188 = sphi 0, %s190
      %s191 = sphi 0, %s188
      %s192 = sphi 0, %s191
      %s208 = sphi 0, %s192
      %s214 = sphi 0, %s216
      %s217 = sphi 0, %s214
      %s218 = sphi 0, %s217
      %s234 = sphi 0, %s218
    $region4: #{tpu_custom_call.1} parent=1 // loop_header_branch
      %29 = sbr.rel (%p27) target = $region8
    $region5: #{tpu_custom_call.1} parent=1 // loop_body
      %s31 = ssub.s32 %s26, 1
      %s32 = ssub.s32 %s26, 2
      %s33 = sadd.s32 %s26, 1
      %s34 = ssub.s32 %s26, %s33
      %p35 = scmp.eq.s32.totalorder %s34, 0
      %s37 = sadd.s32 %s36, 1
      %s38 = scalar_select %p35, %s36, %s37
      %p41 = pneg %p35
      %p42 = scmp.eq.s32.totalorder %s26, 1
      %p43 = por %p41, %p42
      %p44 = scmp.ne.s32.totalorder %s36, %s39
      %p45 = scmp.eq.s32.totalorder %s26, 0
      %p46 = por %p44, %p45
      %p47 = scmp.ne.s32.totalorder %s36, %s39
      %p48 = scmp.eq.s32.totalorder %s31, 1
      %p49 = por %p47, %p48
      %p50 = scmp.ne.s32.totalorder %s39, %s40
      %p51 = scmp.eq.s32.totalorder %s31, 0
      %p52 = por %p50, %p51
      %p53 = scmp.ne.s32.totalorder %s39, %s40
      %p54 = scmp.eq.s32.totalorder %s32, 1
      %p55 = por %p53, %p54
      %p57 = scmp.ne.s32.totalorder %s40, %s56
      %p58 = scmp.eq.s32.totalorder %s32, 0
      %p59 = por %p57, %p58
      %s61 = sadd.s32 %s60, 1
      %p64 = scmp.eq.s32.totalorder %s26, 1
      %p65 = scmp.ne.s32.totalorder %s60, %s62
      %p66 = scmp.eq.s32.totalorder %s26, 0
      %p67 = por %p65, %p66
      %p68 = scmp.ne.s32.totalorder %s60, %s62
      %p69 = scmp.eq.s32.totalorder %s31, 1
      %p70 = por %p68, %p69
      %p71 = scmp.ne.s32.totalorder %s62, %s63
      %p72 = scmp.eq.s32.totalorder %s31, 0
      %p73 = por %p71, %p72
      %p74 = scmp.ne.s32.totalorder %s62, %s63
      %p75 = scmp.eq.s32.totalorder %s32, 1
      %p76 = por %p74, %p75
      %p78 = scmp.ne.s32.totalorder %s63, %s77
      %p79 = scmp.eq.s32.totalorder %s32, 0
      %p80 = por %p78, %p79
      %s82 = sadd.s32 %s81, 1
      %p85 = scmp.eq.s32.totalorder %s26, 1
      %p86 = scmp.ne.s32.totalorder %s81, %s83
      %p87 = scmp.eq.s32.totalorder %s26, 0
      %p88 = por %p86, %p87
      %p89 = scmp.ne.s32.totalorder %s81, %s83
      %p90 = scmp.eq.s32.totalorder %s31, 1
      %p91 = por %p89, %p90
      %p92 = scmp.ne.s32.totalorder %s83, %s84
      %p93 = scmp.eq.s32.totalorder %s31, 0
      %p94 = por %p92, %p93
      %p95 = scmp.ne.s32.totalorder %s83, %s84
      %p96 = scmp.eq.s32.totalorder %s32, 1
      %p97 = por %p95, %p96
      %p99 = scmp.ne.s32.totalorder %s84, %s98
      %p100 = scmp.eq.s32.totalorder %s32, 0
      %p101 = por %p99, %p100
      %s103 = sadd.s32 %s102, 1
      %p106 = scmp.eq.s32.totalorder %s26, 1
      %p107 = scmp.ne.s32.totalorder %s102, %s104
      %p108 = scmp.eq.s32.totalorder %s26, 0
      %p109 = por %p107, %p108
      %p110 = scmp.ne.s32.totalorder %s102, %s104
      %p111 = scmp.eq.s32.totalorder %s31, 1
      %p112 = por %p110, %p111
      %p113 = scmp.ne.s32.totalorder %s104, %s105
      %p114 = scmp.eq.s32.totalorder %s31, 0
      %p115 = por %p113, %p114
      %p116 = scmp.ne.s32.totalorder %s104, %s105
      %p117 = scmp.eq.s32.totalorder %s32, 1
      %p118 = por %p116, %p117
      %p120 = scmp.ne.s32.totalorder %s105, %s119
      %p121 = scmp.eq.s32.totalorder %s32, 0
      %p122 = por %p120, %p121
      %s124 = sadd.s32 %s123, 1
      %p127 = scmp.eq.s32.totalorder %s26, 1
      %p128 = scmp.ne.s32.totalorder %s123, %s125
      %p129 = scmp.eq.s32.totalorder %s26, 0
      %p130 = por %p128, %p129
      %p131 = scmp.ne.s32.totalorder %s123, %s125
      %p132 = scmp.eq.s32.totalorder %s31, 1
      %p133 = por %p131, %p132
      %p134 = scmp.ne.s32.totalorder %s125, %s126
      %p135 = scmp.eq.s32.totalorder %s31, 0
      %p136 = por %p134, %p135
      %p137 = scmp.ne.s32.totalorder %s125, %s126
      %p138 = scmp.eq.s32.totalorder %s32, 1
      %p139 = por %p137, %p138
      %p141 = scmp.ne.s32.totalorder %s126, %s140
      %p142 = scmp.eq.s32.totalorder %s32, 0
      %p143 = por %p141, %p142
      %s145 = sadd.s32 %s144, 1
      %p148 = scmp.eq.s32.totalorder %s26, 1
      %p149 = scmp.ne.s32.totalorder %s144, %s146
      %p150 = scmp.eq.s32.totalorder %s26, 0
      %p151 = por %p149, %p150
      %p152 = scmp.ne.s32.totalorder %s144, %s146
      %p153 = scmp.eq.s32.totalorder %s31, 1
      %p154 = por %p152, %p153
      %p155 = scmp.ne.s32.totalorder %s146, %s147
      %p156 = scmp.eq.s32.totalorder %s31, 0
      %p157 = por %p155, %p156
      %p158 = scmp.ne.s32.totalorder %s146, %s147
      %p159 = scmp.eq.s32.totalorder %s32, 1
      %p160 = por %p158, %p159
      %p162 = scmp.ne.s32.totalorder %s147, %s161
      %p163 = scmp.eq.s32.totalorder %s32, 0
      %p164 = por %p162, %p163
      %s166 = sadd.s32 %s165, 1
      %p169 = scmp.eq.s32.totalorder %s26, 1
      %p170 = scmp.ne.s32.totalorder %s165, %s167
      %p171 = scmp.eq.s32.totalorder %s26, 0
      %p172 = por %p170, %p171
      %p173 = scmp.ne.s32.totalorder %s165, %s167
      %p174 = scmp.eq.s32.totalorder %s31, 1
      %p175 = por %p173, %p174
      %p176 = scmp.ne.s32.totalorder %s167, %s168
      %p177 = scmp.eq.s32.totalorder %s31, 0
      %p178 = por %p176, %p177
      %p179 = scmp.ne.s32.totalorder %s167, %s168
      %p180 = scmp.eq.s32.totalorder %s32, 1
      %p181 = por %p179, %p180
      %p183 = scmp.ne.s32.totalorder %s168, %s182
      %p184 = scmp.eq.s32.totalorder %s32, 0
      %p185 = por %p183, %p184
      %s186 = ssub.s32 %s26, %s33
      %p187 = scmp.eq.s32.totalorder %s186, 0
      %s189 = sadd.s32 %s188, 1
      %s190 = scalar_select %p187, %s188, %s189
      %p193 = pneg %p187
      %p194 = scmp.eq.s32.totalorder %s26, 1
      %p195 = por %p193, %p194
      %p196 = scmp.ne.s32.totalorder %s188, %s191
      %p197 = scmp.eq.s32.totalorder %s26, 0
      %p198 = por %p196, %p197
      %p199 = scmp.ne.s32.totalorder %s188, %s191
      %p200 = scmp.eq.s32.totalorder %s31, 1
      %p201 = por %p199, %p200
      %p202 = scmp.ne.s32.totalorder %s191, %s192
      %p203 = scmp.eq.s32.totalorder %s31, 0
      %p204 = por %p202, %p203
      %p205 = scmp.ne.s32.totalorder %s191, %s192
      %p206 = scmp.eq.s32.totalorder %s32, 1
      %p207 = por %p205, %p206
      %p209 = scmp.ne.s32.totalorder %s192, %s208
      %p210 = scmp.eq.s32.totalorder %s32, 0
      %p211 = por %p209, %p210
      %s212 = ssub.s32 %s26, %s33
      %p213 = scmp.eq.s32.totalorder %s212, 0
      %s215 = sadd.s32 %s214, 1
      %s216 = scalar_select %p213, %s214, %s215
      %p219 = pneg %p213
      %p220 = scmp.eq.s32.totalorder %s26, 1
      %p221 = por %p219, %p220
      %p222 = scmp.ne.s32.totalorder %s214, %s217
      %p223 = scmp.eq.s32.totalorder %s26, 0
      %p224 = por %p222, %p223
      %p225 = scmp.ne.s32.totalorder %s214, %s217
      %p226 = scmp.eq.s32.totalorder %s31, 1
      %p227 = por %p225, %p226
      %p228 = scmp.ne.s32.totalorder %s217, %s218
      %p229 = scmp.eq.s32.totalorder %s31, 0
      %p230 = por %p228, %p229
      %p231 = scmp.ne.s32.totalorder %s217, %s218
      %p232 = scmp.eq.s32.totalorder %s32, 1
      %p233 = por %p231, %p232
      %p235 = scmp.ne.s32.totalorder %s218, %s234
      %p236 = scmp.eq.s32.totalorder %s32, 0
      %p237 = por %p235, %p236
      %p238 = scmp.le.s32.totalorder 1, %s26
      %p239 = scmp.lt.s32.totalorder %s26, 3
      %p240 = pnand %p238, %p239
      %p241 = pneg %p240
      // Predicated region
      $region9: #{tpu_custom_call.1} parent=5 // pred_check
        _
      $region10: #{tpu_custom_call.1} parent=5 // pred_check_branch
        %243 = sbr.rel (%p240) target = $region12
      $region11: #{tpu_custom_call.1} parent=5 // pred_region
        %s244 = ssub.s32 %s26, 1
        // Predicated region
        $region13: #{tpu_custom_call.1} parent=11 // pred_check
          %p245 = pneg %p73
        $region14: #{tpu_custom_call.1} parent=11 // pred_check_branch
          %247 = sbr.rel (%p245) target = $region16
        $region15: #{tpu_custom_call.1} parent=11 // pred_region
          %s249 = ssub.s32 128, 128
          %250 = vsyncadd [#allocation6], %s249
          %s252 = sshll.u32 [#allocation5], 4
          %s253 = int_to_ptr.vmem [resolvable:$true] %s252
          %255 = dma.hbm_to_vmem [thread:$0]  %s1, 128, %s253, [#allocation6]
        $region16: #{tpu_custom_call.1} parent=11 // pred_fallthru
          _
        // Predicated region
        $region17: #{tpu_custom_call.1} parent=11 // pred_check
          %p256 = pneg %p94
        $region18: #{tpu_custom_call.1} parent=11 // pred_check_branch
          %258 = sbr.rel (%p256) target = $region20
        $region19: #{tpu_custom_call.1} parent=11 // pred_region
          _
        $region20: #{tpu_custom_call.1} parent=11 // pred_fallthru
          _
        // Predicated region
        $region21: #{tpu_custom_call.1} parent=11 // pred_check
          %p259 = pneg %p115
        $region22: #{tpu_custom_call.1} parent=11 // pred_check_branch
          %261 = sbr.rel (%p259) target = $region24
        $region23: #{tpu_custom_call.1} parent=11 // pred_region
          %s263 = ssub.s32 16, 16
          %264 = vsyncadd [#allocation6], %s263
          %s266 = sshll.u32 [#allocation7], 4
          %s267 = int_to_ptr.vmem [resolvable:$true] %s266
          %269 = dma.hbm_to_vmem [thread:$0]  %s3, 16, %s267, [#allocation6]
        $region24: #{tpu_custom_call.1} parent=11 // pred_fallthru
          _
        // Predicated region
        $region25: #{tpu_custom_call.1} parent=11 // pred_check
          %p270 = pneg %p136
        $region26: #{tpu_custom_call.1} parent=11 // pred_check_branch
          %272 = sbr.rel (%p270) target = $region28
        $region27: #{tpu_custom_call.1} parent=11 // pred_region
          %s274 = ssub.s32 16, 16
          %275 = vsyncadd [#allocation9], %s274
          %s277 = sshll.u32 [#allocation8], 4
          %s278 = int_to_ptr.vmem [resolvable:$true] %s277
          %280 = dma.hbm_to_vmem [thread:$0]  %s4, 16, %s278, [#allocation9]
        $region28: #{tpu_custom_call.1} parent=11 // pred_fallthru
          _
        // Predicated region
        $region29: #{tpu_custom_call.1} parent=11 // pred_check
          %p281 = pneg %p157
        $region30: #{tpu_custom_call.1} parent=11 // pred_check_branch
          %283 = sbr.rel (%p281) target = $region32
        $region31: #{tpu_custom_call.1} parent=11 // pred_region
          _
        $region32: #{tpu_custom_call.1} parent=11 // pred_fallthru
          _
        // Predicated region
        $region33: #{tpu_custom_call.1} parent=11 // pred_check
          %p284 = pneg %p178
        $region34: #{tpu_custom_call.1} parent=11 // pred_check_branch
          %286 = sbr.rel (%p284) target = $region36
        $region35: #{tpu_custom_call.1} parent=11 // pred_region
          _
        $region36: #{tpu_custom_call.1} parent=11 // pred_fallthru
          _
      $region12: #{tpu_custom_call.1} parent=5 // pred_fallthru
        _
      %p287 = scmp.lt.s32.totalorder %s26, 2
      // Predicated region
      $region37: #{tpu_custom_call.1} parent=5 // pred_check
        %p288 = pneg %p287
      $region38: #{tpu_custom_call.1} parent=5 // pred_check_branch
        %290 = sbr.rel (%p288) target = $region40
      $region39: #{tpu_custom_call.1} parent=5 // pred_region
        // Predicated region
        $region41: #{tpu_custom_call.1} parent=39 // pred_check
          %p291 = pneg %p46
        $region42: #{tpu_custom_call.1} parent=39 // pred_check_branch
          %293 = sbr.rel (%p291) target = $region44
        $region43: #{tpu_custom_call.1} parent=39 // pred_region
          %s294 = sand.u32 %s36, 1
          %s295 = scalar_lea.sflag [#allocation3], %s294
          %s296 = sand.u32 %s36, 1
          %s297 = smul.addr %s296, 32
          %s298 = scalar_lea.vmem [#allocation2], %s297
          %s300 = ssub.s32 512, 512
          %301 = vsyncadd %s295, %s300
          %s302 = smul.addr %s26, 4
          %s303 = smul.addr %s302, 128
          %s304 = scalar_lea.hbm %s0, %s303
          %s305 = sshll.u32 %s298, 4
          %s306 = int_to_ptr.vmem [resolvable:$true] %s305
          %311 = dma.hbm_to_vmem [thread:$0]  %s304, 512, %s306, %s295, 128, 128, 8
        $region44: #{tpu_custom_call.1} parent=39 // pred_fallthru
          _
      $region40: #{tpu_custom_call.1} parent=5 // pred_fallthru
        _
      %p312 = scmp.le.s32.totalorder 1, %s26
      %p313 = scmp.lt.s32.totalorder %s26, 3
      %p314 = pnand %p312, %p313
      %p315 = pneg %p314
      // Predicated region
      $region45: #{tpu_custom_call.1} parent=5 // pred_check
        _
      $region46: #{tpu_custom_call.1} parent=5 // pred_check_branch
        %317 = sbr.rel (%p314) target = $region48
      $region47: #{tpu_custom_call.1} parent=5 // pred_region
        %s318 = ssub.s32 %s26, 1
        %s319 = sand.u32 %s39, 1
        %s320 = scalar_lea.sflag [#allocation3], %s319
        %s321 = sand.u32 %s39, 1
        %s322 = smul.addr %s321, 32
        %s323 = scalar_lea.vmem [#allocation2], %s322
        // Predicated region
        $region49: #{tpu_custom_call.1} parent=47 // pred_check
          %p324 = pneg %p52
        $region50: #{tpu_custom_call.1} parent=47 // pred_check_branch
          %326 = sbr.rel (%p324) target = $region52
        $region51: #{tpu_custom_call.1} parent=47 // pred_region
          %327 = dma.done %s320, 512
        $region52: #{tpu_custom_call.1} parent=47 // pred_fallthru
          _
        // Predicated region
        $region53: #{tpu_custom_call.1} parent=47 // pred_check
          %p328 = pneg %p73
        $region54: #{tpu_custom_call.1} parent=47 // pred_check_branch
          %330 = sbr.rel (%p328) target = $region56
        $region55: #{tpu_custom_call.1} parent=47 // pred_region
          %331 = dma.done [#allocation6], 128
        $region56: #{tpu_custom_call.1} parent=47 // pred_fallthru
          _
        // Predicated region
        $region57: #{tpu_custom_call.1} parent=47 // pred_check
          %p332 = pneg %p115
        $region58: #{tpu_custom_call.1} parent=47 // pred_check_branch
          %334 = sbr.rel (%p332) target = $region60
        $region59: #{tpu_custom_call.1} parent=47 // pred_region
          %335 = dma.done [#allocation6], 16
        $region60: #{tpu_custom_call.1} parent=47 // pred_fallthru
          _
        // Predicated region
        $region61: #{tpu_custom_call.1} parent=47 // pred_check
          %p336 = pneg %p136
        $region62: #{tpu_custom_call.1} parent=47 // pred_check_branch
          %338 = sbr.rel (%p336) target = $region64
        $region63: #{tpu_custom_call.1} parent=47 // pred_region
          %339 = dma.done [#allocation9], 16
        $region64: #{tpu_custom_call.1} parent=47 // pred_fallthru
          _
        %s340 = sand.u32 %s39, 1
        %s341 = scalar_lea.sflag [#allocation3], %s340
        %s342 = sand.u32 %s39, 1
        %s343 = smul.addr %s342, 32
        %s344 = scalar_lea.vmem [#allocation2], %s343
        %p345 = pneg %p52
        %p346 = pneg %p49
        %p347 = pneg %p73
        %p348 = pneg %p70
        %p349 = pneg %p94
        %p350 = pneg %p91
        %p351 = pneg %p115
        %p352 = pneg %p112
        %p353 = pneg %p136
        %p354 = pneg %p133
        %p355 = pneg %p157
        %p356 = pneg %p154
        %p357 = pneg %p178
        %p358 = pneg %p175
        %p359 = pneg %p204
        %p360 = pneg %p201
        %s361 = sand.u32 %s191, 1
        %s362 = scalar_lea.sflag [#allocation4], %s361
        %s363 = sand.u32 %s191, 1
        %s364 = smul.addr %s363, 32
        %s365 = scalar_lea.vmem [#allocation10], %s364
        %p366 = pneg %p230
        %p367 = pneg %p227
        %s368 = sand.u32 %s217, 1
        %s369 = scalar_lea.sflag [#allocation12], %s368
        %s370 = sand.u32 %s217, 1
        %s371 = smul.addr %s370, 32
        %s372 = scalar_lea.vmem [#allocation11], %s371
        %v373 = vld [vmem:[%s323] sm:$0xff]
        %v374 = vld [vmem:[%s323 + $0x8] sm:$0xff]
        %v375 = vld [vmem:[%s323 + $0x10] sm:$0xff]
        %v376 = vld [vmem:[%s323 + $0x18] sm:$0xff]
        %v377 = vld [vmem:[#allocation5] sm:$0xff]
        %v378 = vld [vmem:[%s2] sm:$0x1]
        %v380 = vlaneseq
        %v381 = vshrl.u32 %v380, 7
        %v382 = vsub.s32 0, %v381
        %v383 = vrot.slane %v378, %v382
        %vm385 = vcmask 64512
        %v387 = vsel %vm385, %v373, 0
        %v390 = vsel %vm385, %v374, 0
        %v393 = vsel %vm385, %v375, 0
        %v396 = vsel %vm385, %v376, 0
        %398 = vmatprep.subr.mxu0 0.0
        %399 = vmatpush1.msra.mxu0 0.0
        %400 = vmatprep.subr.mxu0 0.0
        %401 = vmatpush1.msra.mxu0 0.0
        %402 = vmatprep.subr.mxu0 0.0
        %403 = vmatpush1.msra.mxu0 0.0
        %404 = vmatprep.subr.mxu0 0.0
        %405 = vmatpush1.msra.mxu0 0.0
        %406 = vmatprep.subr.mxu0 0.0
        %407 = vmatpush1.msra.mxu0 0.0
        %408 = vmatprep.subr.mxu0 0.0
        %409 = vmatpush1.msra.mxu0 0.0
        %410 = vmatprep.subr.mxu0 0.0
        %411 = vmatpush1.msra.mxu0 0.0
        %412 = vmatprep.subr.mxu0 0.0
        %413 = vmatpush1.msra.mxu0 0.0
        %414 = vmatprep.subr.mxu0 0.0
        %415 = vmatpush1.msra.mxu0 0.0
        %416 = vmatprep.subr.mxu0 0.0
        %417 = vmatpush1.msra.mxu0 0.0
        %418 = vmatprep.subr.mxu0 0.0
        %419 = vmatpush1.msra.mxu0 0.0
        %420 = vmatprep.subr.mxu0 0.0
        %421 = vmatpush1.msra.mxu0 0.0
        %422 = vmatprep.subr.mxu0 0.0
        %423 = vmatpush1.msra.mxu0 0.0
        %424 = vmatprep.subr.mxu0 0.0
        %425 = vmatpush1.msra.mxu0 0.0
        %426 = vmatprep.subr.mxu0 0.0
        %427 = vmatpush1.msra.mxu0 0.0
        %428 = vmatprep.subr.mxu0 0.0
        %429 = vmatpush1.msra.mxu0 %v377
        %430 = vmatprep.subr.mxu0 0.0
        %431 = vmatpush2.msra.mxu0 0.0
        %432 = vmatprep.subr.mxu0 0.0
        %433 = vmatpush2.msra.mxu0 0.0
        %434 = vmatprep.subr.mxu0 0.0
        %435 = vmatpush2.msra.mxu0 0.0
        %436 = vmatprep.subr.mxu0 0.0
        %437 = vmatpush2.msra.mxu0 0.0
        %438 = vmatprep.subr.mxu0 0.0
        %439 = vmatpush2.msra.mxu0 0.0
        %440 = vmatprep.subr.mxu0 0.0
        %441 = vmatpush2.msra.mxu0 0.0
        %442 = vmatprep.subr.mxu0 0.0
        %443 = vmatpush2.msra.mxu0 0.0
        %444 = vmatprep.subr.mxu0 0.0
        %445 = vmatpush2.msra.mxu0 0.0
        %446 = vmatprep.subr.mxu0 0.0
        %447 = vmatpush2.msra.mxu0 0.0
        %448 = vmatprep.subr.mxu0 0.0
        %449 = vmatpush2.msra.mxu0 0.0
        %450 = vmatprep.subr.mxu0 0.0
        %451 = vmatpush2.msra.mxu0 0.0
        %452 = vmatprep.subr.mxu0 0.0
        %453 = vmatpush2.msra.mxu0 0.0
        %454 = vmatprep.subr.mxu0 0.0
        %455 = vmatpush2.msra.mxu0 0.0
        %456 = vmatprep.subr.mxu0 0.0
        %457 = vmatpush2.msra.mxu0 0.0
        %458 = vmatprep.subr.mxu0 0.0
        %459 = vmatpush2.msra.mxu0 0.0
        %460 = vmatprep.subr.mxu0 0.0
        %461 = vmatpush2.msra.mxu0 0.0
        %462 = vmatprep.mubr.f32.mxu0 0.0
        %463 = vmatmul.mubr.f32.gmra.mxu0 %v387
        %v464 = vpop.f32.mrf.mxu0
        %v465 = vadd.f32 %v383, %v464
        %v466 = vpop.f32.mrf.mxu0
        %467 = vmatprep.mubr.f32.mxu0 0.0
        %468 = vmatmul.mubr.f32.gmra.mxu0 %v390
        %v469 = vpop.f32.mrf.mxu0
        %v470 = vadd.f32 %v383, %v469
        %v471 = vpop.f32.mrf.mxu0
        %472 = vmatprep.mubr.f32.mxu0 0.0
        %473 = vmatmul.mubr.f32.gmra.mxu0 %v393
        %v474 = vpop.f32.mrf.mxu0
        %v475 = vadd.f32 %v383, %v474
        %v476 = vpop.f32.mrf.mxu0
        %477 = vmatprep.mubr.f32.mxu0 0.0
        %478 = vmatmul.mubr.f32.gmra.mxu0 %v396
        %v479 = vpop.f32.mrf.mxu0
        %v480 = vadd.f32 %v383, %v479
        %v481 = vpop.f32.mrf.mxu0
        %482 = vdwg.mxu0
        %v483 = vld [vmem:[#allocation7] sm:$0x1]
        %v484 = vld [vmem:[#allocation8] sm:$0x1]
        %vm485 = vcmask 130048
        %v486 = vsel %vm485, %v465, 0.0
        %487 = vadd.xlane.f32.xlu0 %v486
        %v488 = vpop.xlane.xlu0 %487
        %v489 = vsel %vm485, %v470, 0.0
        %490 = vadd.xlane.f32.xlu0 %v489
        %v491 = vpop.xlane.xlu0 %490
        %v492 = vsel %vm485, %v475, 0.0
        %493 = vadd.xlane.f32.xlu0 %v492
        %v494 = vpop.xlane.xlu0 %493
        %v495 = vsel %vm485, %v480, 0.0
        %496 = vadd.xlane.f32.xlu0 %v495
        %v497 = vpop.xlane.xlu0 %496
        %v498 = vrcp.pop 16.0
        %v499 = vmul.f32 %v488, %v498
        %v500 = vmul.f32 %v491, %v498
        %v501 = vmul.f32 %v494, %v498
        %v502 = vmul.f32 %v497, %v498
        %v503 = vsub.f32 %v465, %v499
        %v504 = vsub.f32 %v470, %v500
        %v505 = vsub.f32 %v475, %v501
        %v506 = vsub.f32 %v480, %v502
        %v507 = vmul.f32 %v503, %v503
        %v508 = vmul.f32 %v504, %v504
        %v509 = vmul.f32 %v505, %v505
        %v510 = vmul.f32 %v506, %v506
        %v511 = vsel %vm485, %v507, 0.0
        %512 = vadd.xlane.f32.xlu0 %v511
        %v513 = vpop.xlane.xlu0 %512
        %v514 = vsel %vm485, %v508, 0.0
        %515 = vadd.xlane.f32.xlu0 %v514
        %v516 = vpop.xlane.xlu0 %515
        %v517 = vsel %vm485, %v509, 0.0
        %518 = vadd.xlane.f32.xlu0 %v517
        %v519 = vpop.xlane.xlu0 %518
        %v520 = vsel %vm485, %v510, 0.0
        %521 = vadd.xlane.f32.xlu0 %v520
        %v522 = vpop.xlane.xlu0 %521
        %v523 = vmul.f32 %v513, %v498
        %v524 = vmul.f32 %v516, %v498
        %v525 = vmul.f32 %v519, %v498
        %v526 = vmul.f32 %v522, %v498
        %v527 = vadd.f32 %v523, 1e-05
        %v528 = vadd.f32 %v524, 1e-05
        %v529 = vadd.f32 %v525, 1e-05
        %v530 = vadd.f32 %v526, 1e-05
        %v531 = vrsqrt.pop %v527
        %v532 = vrsqrt.pop %v528
        %v533 = vrsqrt.pop %v529
        %v534 = vrsqrt.pop %v530
        %v535 = vmul.f32 %v503, %v531
        %v536 = vmul.f32 %v504, %v532
        %v537 = vmul.f32 %v505, %v533
        %v538 = vmul.f32 %v506, %v534
        %v540 = vlaneseq
        %v541 = vshrl.u32 %v540, 7
        %v542 = vsub.s32 0, %v541
        %v543 = vrot.slane %v483, %v542
        %v545 = vmul.f32 %v535, %v543
        %v546 = vmul.f32 %v536, %v543
        %v547 = vmul.f32 %v537, %v543
        %v548 = vmul.f32 %v538, %v543
        %v550 = vlaneseq
        %v551 = vshrl.u32 %v550, 7
        %v552 = vsub.s32 0, %v551
        %v553 = vrot.slane %v484, %v552
        %v555 = vadd.f32 %v545, %v553
        %v556 = vadd.f32 %v546, %v553
        %v557 = vadd.f32 %v547, %v553
        %v558 = vadd.f32 %v548, %v553
        %v559 = vld [vmem:[%s5] sm:$0xff]
        %v560 = vld [vmem:[%s6] sm:$0x1]
        %v562 = vlaneseq
        %v563 = vshrl.u32 %v562, 7
        %v564 = vsub.s32 0, %v563
        %v565 = vrot.slane %v560, %v564
        %567 = vmatprep.subr.mxu0 0.0
        %568 = vmatpush1.msra.mxu0 0.0
        %569 = vmatprep.subr.mxu0 0.0
        %570 = vmatpush1.msra.mxu0 0.0
        %571 = vmatprep.subr.mxu0 0.0
        %572 = vmatpush1.msra.mxu0 0.0
        %573 = vmatprep.subr.mxu0 0.0
        %574 = vmatpush1.msra.mxu0 0.0
        %575 = vmatprep.subr.mxu0 0.0
        %576 = vmatpush1.msra.mxu0 0.0
        %577 = vmatprep.subr.mxu0 0.0
        %578 = vmatpush1.msra.mxu0 0.0
        %579 = vmatprep.subr.mxu0 0.0
        %580 = vmatpush1.msra.mxu0 0.0
        %581 = vmatprep.subr.mxu0 0.0
        %582 = vmatpush1.msra.mxu0 0.0
        %583 = vmatprep.subr.mxu0 0.0
        %584 = vmatpush1.msra.mxu0 0.0
        %585 = vmatprep.subr.mxu0 0.0
        %586 = vmatpush1.msra.mxu0 0.0
        %587 = vmatprep.subr.mxu0 0.0
        %588 = vmatpush1.msra.mxu0 0.0
        %589 = vmatprep.subr.mxu0 0.0
        %590 = vmatpush1.msra.mxu0 0.0
        %591 = vmatprep.subr.mxu0 0.0
        %592 = vmatpush1.msra.mxu0 0.0
        %593 = vmatprep.subr.mxu0 0.0
        %594 = vmatpush1.msra.mxu0 0.0
        %595 = vmatprep.subr.mxu0 0.0
        %596 = vmatpush1.msra.mxu0 0.0
        %597 = vmatprep.subr.mxu0 0.0
        %598 = vmatpush1.msra.mxu0 %v559
        %599 = vmatprep.subr.mxu0 0.0
        %600 = vmatpush2.msra.mxu0 0.0
        %601 = vmatprep.subr.mxu0 0.0
        %602 = vmatpush2.msra.mxu0 0.0
        %603 = vmatprep.subr.mxu0 0.0
        %604 = vmatpush2.msra.mxu0 0.0
        %605 = vmatprep.subr.mxu0 0.0
        %606 = vmatpush2.msra.mxu0 0.0
        %607 = vmatprep.subr.mxu0 0.0
        %608 = vmatpush2.msra.mxu0 0.0
        %609 = vmatprep.subr.mxu0 0.0
        %610 = vmatpush2.msra.mxu0 0.0
        %611 = vmatprep.subr.mxu0 0.0
        %612 = vmatpush2.msra.mxu0 0.0
        %613 = vmatprep.subr.mxu0 0.0
        %614 = vmatpush2.msra.mxu0 0.0
        %615 = vmatprep.subr.mxu0 0.0
        %616 = vmatpush2.msra.mxu0 0.0
        %617 = vmatprep.subr.mxu0 0.0
        %618 = vmatpush2.msra.mxu0 0.0
        %619 = vmatprep.subr.mxu0 0.0
        %620 = vmatpush2.msra.mxu0 0.0
        %621 = vmatprep.subr.mxu0 0.0
        %622 = vmatpush2.msra.mxu0 0.0
        %623 = vmatprep.subr.mxu0 0.0
        %624 = vmatpush2.msra.mxu0 0.0
        %625 = vmatprep.subr.mxu0 0.0
        %626 = vmatpush2.msra.mxu0 0.0
        %627 = vmatprep.subr.mxu0 0.0
        %628 = vmatpush2.msra.mxu0 0.0
        %629 = vmatprep.subr.mxu0 0.0
        %630 = vmatpush2.msra.mxu0 0.0
        %631 = vmatprep.mubr.f32.mxu0 0.0
        %632 = vmatmul.mubr.f32.gmra.mxu0 %v387
        %v633 = vpop.f32.mrf.mxu0
        %v634 = vadd.f32 %v565, %v633
        %v635 = vpop.f32.mrf.mxu0
        %636 = vmatprep.mubr.f32.mxu0 0.0
        %637 = vmatmul.mubr.f32.gmra.mxu0 %v390
        %v638 = vpop.f32.mrf.mxu0
        %v639 = vadd.f32 %v565, %v638
        %v640 = vpop.f32.mrf.mxu0
        %641 = vmatprep.mubr.f32.mxu0 0.0
        %642 = vmatmul.mubr.f32.gmra.mxu0 %v393
        %v643 = vpop.f32.mrf.mxu0
        %v644 = vadd.f32 %v565, %v643
        %v645 = vpop.f32.mrf.mxu0
        %646 = vmatprep.mubr.f32.mxu0 0.0
        %647 = vmatmul.mubr.f32.gmra.mxu0 %v396
        %v648 = vpop.f32.mrf.mxu0
        %v649 = vadd.f32 %v565, %v648
        %v650 = vpop.f32.mrf.mxu0
        %651 = vdwg.mxu0
        %v652 = vmax.f32 %v634, -20.0
        %v653 = vmax.f32 %v639, -20.0
        %v654 = vmax.f32 %v644, -20.0
        %v655 = vmax.f32 %v649, -20.0
        %v656 = vmin.f32 %v652, 20.0
        %v657 = vmin.f32 %v653, 20.0
        %v658 = vmin.f32 %v654, 20.0
        %v659 = vmin.f32 %v655, 20.0
        %v660 = vsel %vm485, %v656, -inf
        %v661 = vsel %vm485, %v657, -inf
        %v662 = vsel %vm485, %v658, -inf
        %v663 = vsel %vm485, %v659, -inf
        %v664 = vmax.f32 %v660, %v661
        %v665 = vmax.f32 %v662, %v663
        %v666 = vmax.f32 %v664, %v665
        %v667 = vsub.f32 %v656, %v666
        %v668 = vsub.f32 %v657, %v666
        %v669 = vsub.f32 %v658, %v666
        %v670 = vsub.f32 %v659, %v666
        %671 = vst.msk [vmem:[%s365] sm:$0xff] %vm485, %v555
        %672 = vst.msk [vmem:[%s365 + $0x8] sm:$0xff] %vm485, %v556
        %673 = vst.msk [vmem:[%s365 + $0x10] sm:$0xff] %vm485, %v557
        %674 = vst.msk [vmem:[%s365 + $0x18] sm:$0xff] %vm485, %v558
        %v675 = vmul.f32 %v667, 1.442695
        %v676 = vpow.pop %v675
        %v677 = vmul.f32 %v668, 1.442695
        %v678 = vpow.pop %v677
        %v679 = vmul.f32 %v669, 1.442695
        %v680 = vpow.pop %v679
        %v681 = vmul.f32 %v670, 1.442695
        %v682 = vpow.pop %v681
        %683 = vst.msk [vmem:[%s372] sm:$0xff] %vm485, %v676
        %684 = vst.msk [vmem:[%s372 + $0x8] sm:$0xff] %vm485, %v678
        %685 = vst.msk [vmem:[%s372 + $0x10] sm:$0xff] %vm485, %v680
        %686 = vst.msk [vmem:[%s372 + $0x18] sm:$0xff] %vm485, %v682
        %s687 = sand.u32 %s191, 1
        %s688 = scalar_lea.sflag [#allocation4], %s687
        %s689 = sand.u32 %s191, 1
        %s690 = smul.addr %s689, 32
        %s691 = scalar_lea.vmem [#allocation10], %s690
        %s692 = sand.u32 %s217, 1
        %s693 = scalar_lea.sflag [#allocation12], %s692
        %s694 = sand.u32 %s217, 1
        %s695 = smul.addr %s694, 32
        %s696 = scalar_lea.vmem [#allocation11], %s695
        // Predicated region
        $region65: #{tpu_custom_call.1} parent=47 // pred_check
          %p697 = pneg %p201
        $region66: #{tpu_custom_call.1} parent=47 // pred_check_branch
          %699 = sbr.rel (%p697) target = $region68
        $region67: #{tpu_custom_call.1} parent=47 // pred_region
          %s701 = ssub.s32 512, 512
          %702 = vsyncadd %s688, %s701
          %s703 = smul.addr %s31, 4
          %s704 = smul.addr %s703, 128
          %s705 = scalar_lea.hbm %s7, %s704
          %s706 = sshll.u32 %s691, 4
          %s707 = int_to_ptr.vmem [resolvable:$true] %s706
          %712 = dma.vmem_to_hbm [thread:$0]  %s707, 512, %s705, %s688, 128, 128, 8
        $region68: #{tpu_custom_call.1} parent=47 // pred_fallthru
          _
        // Predicated region
        $region69: #{tpu_custom_call.1} parent=47 // pred_check
          %p713 = pneg %p227
        $region70: #{tpu_custom_call.1} parent=47 // pred_check_branch
          %715 = sbr.rel (%p713) target = $region72
        $region71: #{tpu_custom_call.1} parent=47 // pred_region
          %s717 = ssub.s32 512, 512
          %718 = vsyncadd %s693, %s717
          %s719 = smul.addr %s31, 4
          %s720 = smul.addr %s719, 128
          %s721 = scalar_lea.hbm %s8, %s720
          %s722 = sshll.u32 %s696, 4
          %s723 = int_to_ptr.vmem [resolvable:$true] %s722
          %728 = dma.vmem_to_hbm [thread:$0]  %s723, 512, %s721, %s693, 128, 128, 8
        $region72: #{tpu_custom_call.1} parent=47 // pred_fallthru
          _
      $region48: #{tpu_custom_call.1} parent=5 // pred_fallthru
        _
      %p729 = scmp.le.s32.totalorder 2, %s26
      // Predicated region
      $region73: #{tpu_custom_call.1} parent=5 // pred_check
        %p730 = pneg %p729
      $region74: #{tpu_custom_call.1} parent=5 // pred_check_branch
        %732 = sbr.rel (%p730) target = $region76
      $region75: #{tpu_custom_call.1} parent=5 // pred_region
        %s733 = ssub.s32 %s26, 2
        // Predicated region
        $region77: #{tpu_custom_call.1} parent=75 // pred_check
          %p734 = pneg %p207
        $region78: #{tpu_custom_call.1} parent=75 // pred_check_branch
          %736 = sbr.rel (%p734) target = $region80
        $region79: #{tpu_custom_call.1} parent=75 // pred_region
          %s737 = sand.u32 %s192, 1
          %s738 = scalar_lea.sflag [#allocation4], %s737
          %s739 = sand.u32 %s192, 1
          %s740 = smul.addr %s739, 32
          %s741 = scalar_lea.vmem [#allocation10], %s740
          %742 = dma.done %s738, 512
        $region80: #{tpu_custom_call.1} parent=75 // pred_fallthru
          _
        // Predicated region
        $region81: #{tpu_custom_call.1} parent=75 // pred_check
          %p743 = pneg %p233
        $region82: #{tpu_custom_call.1} parent=75 // pred_check_branch
          %745 = sbr.rel (%p743) target = $region84
        $region83: #{tpu_custom_call.1} parent=75 // pred_region
          %s746 = sand.u32 %s218, 1
          %s747 = scalar_lea.sflag [#allocation12], %s746
          %s748 = sand.u32 %s218, 1
          %s749 = smul.addr %s748, 32
          %s750 = scalar_lea.vmem [#allocation11], %s749
          %751 = dma.done %s747, 512
        $region84: #{tpu_custom_call.1} parent=75 // pred_fallthru
          _
      $region76: #{tpu_custom_call.1} parent=5 // pred_fallthru
        _
    $region6: #{tpu_custom_call.1} parent=1 // loop_footer
      %s30 = sadd.s32 1, %s26
    $region7: #{tpu_custom_call.1} parent=1 // loop_footer_branch
      %25 = sbr.rel target = $region3
    $region8: #{tpu_custom_call.1} parent=1 // loop_exit
      _
    %752 = vsyncpa [#allocation3], 1
    %s753 = scalar_lea.sflag [#allocation3], 1
    %754 = vsyncpa %s753, 1
    %755 = vsyncpa [#allocation6], 1
    %756 = vsyncpa [#allocation9], 1
    %757 = vsyncpa [#allocation4], 1
    %s758 = scalar_lea.sflag [#allocation4], 1
    %759 = vsyncpa %s758, 1
    %760 = vsyncpa [#allocation12], 1
    %s761 = scalar_lea.sflag [#allocation12], 1
    %762 = vsyncpa %s761, 1

</llo_original>
